<compile_context>
chip_gen: v7x
topology: tpu7x:2x2x1
jax: 0.10.0
libtpu: 0.0.40
codegen_flags: <defaults>
</compile_context>

<pallas_src>
import functools

import numpy as np
import jax
import jax.numpy as jnp
from jax.experimental import pallas as pl
from jax.experimental.pallas import tpu as pltpu


_LANE = 128
_SUBLANE = 8
_SMALL_PROBLEM_ELEMS = 1 << 16   # below this, plain XLA beats kernel-launch overhead


def _round_up(x: int, m: int) -> int:
    return ((x + m - 1) // m) * m


@functools.lru_cache(maxsize=None)
def _adaptive_pool_matrix(h: int, f: int) -> np.ndarray:
    """(H, F) matrix implementing 1-D adaptive average pooling H -> F (PyTorch windows).

    Returned as numpy so jit constant-folds it (no device buffers pinned by the cache)."""
    p = np.zeros((h, f), dtype=np.float32)
    for j in range(f):
        start = (j * h) // f
        end = -((-(j + 1) * h) // f)       # ceil((j + 1) * h / f)
        p[start:end, j] = 1.0 / (end - start)
    return p


@functools.lru_cache(maxsize=1)
def _vmem_capacity_bytes() -> int:
    """Physical VMEM per core; conservative 64 MiB (v7x) fallback if the query fails."""
    try:
        info = pltpu.get_tpu_info()
        for attr in ("vmem_capacity_bytes", "vmem_bytes", "vmem_size_bytes"):
            cap = getattr(info, attr, None)
            if cap:
                return int(cap)
    except Exception:
        pass
    return 64 * 1024 * 1024


def _mean_proj_kernel(x_ref, w_ref, b_ref, o_ref, acc_ref, *, inv_t):
    """Accumulate sum over the T grid axis; at the last T step: mean @ W + b.

    x_ref:   (tile_n, tile_t, L)   stacked-batch tile of the (lane-folded) input
    w_ref:   (L, F_pad)            fused projection + pool weight
    b_ref:   (1, F_pad)            fused bias
    o_ref:   (tile_n, F_pad)       pooled output rows
    acc_ref: (tile_n, L)           running time-sum (VMEM scratch, f32)
    """
    k = pl.program_id(1)

    @pl.when(k == 0)
    def _init():
        acc_ref[...] = jnp.zeros_like(acc_ref)

    # Zero-padded rows / time steps contribute 0 to the sum.
    acc_ref[...] += jnp.sum(x_ref[...].astype(jnp.float32), axis=1)

    @pl.when(k == pl.num_programs(1) - 1)
    def _finish():
        mean = acc_ref[...] * inv_t                                       # (tile_n, L)
        out = jnp.dot(mean, w_ref[...],
                      preferred_element_type=jnp.float32) + b_ref[...]    # (tile_n, F_pad)
        o_ref[...] = out.astype(o_ref.dtype)


def _fold_time_into_lanes(x):
    """Fold g = 128 // D_in time steps into the lane dim when D_in < 128 and divides 128.

    The time-sum is invariant under this folding; padded time steps are zero."""
    n, t, d = x.shape
    if d >= _LANE or _LANE % d != 0:
        return x, 1
    g = _LANE // d
    t_pad = _round_up(t, g)
    if t_pad != t:
        x = jnp.pad(x, ((0, 0), (0, t_pad - t), (0, 0)))
    return x.reshape(n, t_pad // g, g * d), g


def _choose_tiles(n: int, t_f: int, lane: int, f_pad: int, x_itemsize: int):
    """Pick (tile_n, n_pad, tile_t) from an explicit VMEM byte budget."""
    capacity = _vmem_capacity_bytes()
    lane_pad = _round_up(lane, _LANE)            # last dim lane-pads to 128 in VMEM

    # Batch tiling: sublane-friendly.  Keep >= 2 tiles on the parallel axis when the
    # batch can be split, so the second TensorCore (v7x megacore) is not idle; for the
    # typical power-of-two batch this adds no padding and is neutral on 1-TC chips.
    tile_n = min(_round_up(n, _SUBLANE), 256)
    n_pad = _round_up(n, tile_n)
    if n_pad // tile_n < 2 and n_pad >= 2 * _SUBLANE:
        tile_n = _round_up(-(-n_pad // 2), _SUBLANE)
        n_pad = _round_up(n, tile_n)

    # Fixed VMEM costs (f32): fused weight + bias + output (double-buffered) + accumulator.
    fixed = (2 * lane_pad * f_pad * 4
             + 2 * _SUBLANE * f_pad * 4
             + 2 * tile_n * f_pad * 4
             + tile_n * lane_pad * 4)

    # x tiles are double-buffered; spend ~70% of physical VMEM on them.
    budget = int(0.70 * capacity) - fixed
    per_step = 2 * tile_n * lane_pad * x_itemsize
    tile_t = max(_SUBLANE, (budget // per_step // _SUBLANE) * _SUBLANE)
    tile_t = min(tile_t, _round_up(t_f, _SUBLANE), 4096)
    return tile_n, n_pad, tile_t, capacity


def _mean_project(x, wp, bp):
    """pooled[n, :] = mean_t(x[n]) @ wp + bp  via one pallas_call."""
    N, T, _ = x.shape
    F = wp.shape[1]
    inv_t = 1.0 / T                                   # mean over the ORIGINAL T

    # Lane-densify small feature dims.
    x, g = _fold_time_into_lanes(x)
    _, T_f, L = x.shape
    wp_l = jnp.tile(wp, (g, 1)) if g > 1 else wp      # (L, F): same W for every fold group

    # Pad F up to 128 for unmasked, lane-dense output stores.
    F_pad = _round_up(max(F, _LANE), _LANE)
    if F_pad != F:
        wp_l = jnp.pad(wp_l, ((0, 0), (0, F_pad - F)))
        bp = jnp.pad(bp, (0, F_pad - F))
    wp_l = wp_l.astype(jnp.float32)
    bp_l = bp.reshape(1, F_pad).astype(jnp.float32)

    tile_n, n_pad, tile_t, capacity = _choose_tiles(N, T_f, L, F_pad, x.dtype.itemsize)
    t_pad = _round_up(T_f, tile_t)
    if (n_pad, t_pad) != (N, T_f):
        x = jnp.pad(x, ((0, n_pad - N), (0, t_pad - T_f), (0, 0)))

    grid = (n_pad // tile_n, t_pad // tile_t)   # (parallel batch, arbitrary T-reduction)
    kernel = functools.partial(_mean_proj_kernel, inv_t=inv_t)

    out = pl.pallas_call(
        kernel,
        out_shape=jax.ShapeDtypeStruct((n_pad, F_pad), jnp.float32),
        grid=grid,
        in_specs=[
            pl.BlockSpec((tile_n, tile_t, L), lambda i, k: (i, k, 0)),
            pl.BlockSpec((L, F_pad), lambda i, k: (0, 0)),
            pl.BlockSpec((1, F_pad), lambda i, k: (0, 0)),
        ],
        out_specs=pl.BlockSpec((tile_n, F_pad), lambda i, k: (i, 0)),
        scratch_shapes=[pltpu.VMEM((tile_n, L), jnp.float32)],
        compiler_params=pltpu.CompilerParams(
            dimension_semantics=("parallel", "arbitrary"),
            vmem_limit_bytes=int(min(capacity, 128 * 1024 * 1024)),
        ),
    )(x, wp_l, bp_l)
    return out[:N, :F]


@functools.partial(jax.jit,
                   static_argnames=("final_feat_dim", "force_pallas", "stream_bf16"))
def pretrained_speech_models_forward(x1, x2, w, b, *, final_feat_dim,
                                     force_pallas=False, stream_bf16=False):
    """Full forward: both branches fused into one kernel call, concat along last dim."""
    B = x1.shape[0]
    H = w.shape[1]
    pool_mat = jnp.asarray(_adaptive_pool_matrix(H, final_feat_dim))   # (H, F)
    wp = jnp.dot(w.astype(jnp.float32), pool_mat)                      # (D_in, F) fused weight
    bp = jnp.dot(b.astype(jnp.float32), pool_mat)                      # (F,)      fused bias

    x = jnp.concatenate([x1, x2], axis=0)                              # (2B, T, D_in)

    if (not force_pallas) and x.size <= _SMALL_PROBLEM_ELEMS:
        # Kernel-launch / per-grid-step overhead dominates at tiny sizes: stay in XLA.
        pooled = jnp.mean(x.astype(jnp.float32), axis=1) @ wp + bp[None, :]
    else:
        if stream_bf16:
            # HBM-bound kernel: halve bytes/element; accumulation stays f32 (opt-in, inexact).
            x = x.astype(jnp.bfloat16)
        pooled = _mean_project(x, wp, bp)                              # (2B, F)

    return jnp.concatenate([pooled[:B], pooled[B:]], axis=-1)          # (B, 2F)


def _reference(x1, x2, w, b, final_feat_dim):
    """Pure-JAX reference, computed the original (un-fused) way."""
    pool_mat = jnp.asarray(_adaptive_pool_matrix(w.shape[1], final_feat_dim))

    def branch(x):
        hidden = jnp.einsum("btd,dh->bth", x, w) + b[None, None, :]
        return jnp.mean(hidden, axis=1) @ pool_mat

    return jnp.concatenate([branch(x1), branch(x2)], axis=-1)


if __name__ == "__main__":
    B, T, D_IN, HID, FINAL_FEAT_DIM = 2, 8, 32, 32, 8

    key = jax.random.PRNGKey(0)
    k1, k2, kw, kb = jax.random.split(key, 4)
    x1 = jax.random.normal(k1, (B, T, D_IN), dtype=jnp.float32)
    x2 = jax.random.normal(k2, (B, T, D_IN), dtype=jnp.float32)
    # Deterministic synthetic backbone parameters (linear stub for the hub model).
    w = jax.random.normal(kw, (D_IN, HID), dtype=jnp.float32) * 0.1
    b = jax.random.normal(kb, (HID,), dtype=jnp.float32) * 0.01

    # force_pallas=True so the Pallas path is exercised even at these tiny test shapes.
    out = pretrained_speech_models_forward(
        x1, x2, w, b, final_feat_dim=FINAL_FEAT_DIM, force_pallas=True)
    out = jax.block_until_ready(out)

    ref = _reference(x1, x2, w, b, FINAL_FEAT_DIM)
    assert out.shape == (B, 2 * FINAL_FEAT_DIM), out.shape
    assert jnp.allclose(out, ref, atol=1e-5, rtol=1e-5), "mismatch vs reference"

    print("KERNEL_OK")
</pallas_src>

<mosaic_0001>
module attributes {stable_mosaic.version = 11 : i64} {
  func.func @_mean_proj_kernel(%arg0: i32, %arg1: i32, %arg2: memref<8x8x128xf32, #tpu.memory_space<vmem>>, %arg3: memref<128x128xf32, #tpu.memory_space<vmem>>, %arg4: memref<1x128xf32, #tpu.memory_space<vmem>>, %arg5: memref<8x128xf32, #tpu.memory_space<vmem>>, %arg6: memref<8x128xf32, #tpu.memory_space<vmem>>) attributes {dimension_semantics = [#tpu.dimension_semantics<parallel>, #tpu.dimension_semantics<arbitrary>], iteration_bounds = array<i64: 1, 1>, scalar_prefetch = 0 : i64, scratch_operands = 1 : i64, tpu.core_type = #tpu.core_type<tc>, window_params = [{transform_indices = @transform_0, window_bounds = array<i64: 8, 8, 128>}, {pipeline_mode = #tpu.pipeline_mode<synchronous>, transform_indices = @transform_1, window_bounds = array<i64: 128, 128>}, {pipeline_mode = #tpu.pipeline_mode<synchronous>, transform_indices = @transform_2, window_bounds = array<i64: 1, 128>}, {transform_indices = @transform_3, window_bounds = array<i64: 8, 128>}]} {
    %c0_i32 = arith.constant 0 : i32
    %0 = arith.cmpi eq, %arg1, %c0_i32 : i32
    %1 = arith.extui %0 : i1 to i32
    %c0_i32_0 = arith.constant 0 : i32
    %2 = arith.cmpi ne, %1, %c0_i32_0 : i32
    scf.if %2 {
      %cst_9 = arith.constant 0.000000e+00 : f32
      %11 = vector.broadcast %cst_9 : f32 to vector<8x128xf32>
      %c0_10 = arith.constant 0 : index
      %c0_11 = arith.constant 0 : index
      %12 = vector.load %arg6[%c0_10, %c0_11] : memref<8x128xf32, #tpu.memory_space<vmem>>, vector<8x128xf32>
      tpu.vector_store %arg6[%c0_10, %c0_11], %11 {strides = array<i32>} : memref<8x128xf32, #tpu.memory_space<vmem>>, vector<8x128xf32>,
    } else {
    }
    %c0 = arith.constant 0 : index
    %c0_1 = arith.constant 0 : index
    %3 = vector.load %arg6[%c0, %c0_1] : memref<8x128xf32, #tpu.memory_space<vmem>>, vector<8x128xf32>
    %c0_2 = arith.constant 0 : index
    %c0_3 = arith.constant 0 : index
    %c0_4 = arith.constant 0 : index
    %4 = vector.load %arg2[%c0_2, %c0_3, %c0_4] : memref<8x8x128xf32, #tpu.memory_space<vmem>>, vector<8x8x128xf32>
    %cst = arith.constant dense<0.000000e+00> : vector<8x128xf32>
    %5 = vector.multi_reduction <add>, %4, %cst [1] : vector<8x8x128xf32> to vector<8x128xf32>
    %6 = arith.addf %3, %5 : vector<8x128xf32>
    %c0_5 = arith.constant 0 : index
    %c0_6 = arith.constant 0 : index
    %7 = vector.load %arg6[%c0_5, %c0_6] : memref<8x128xf32, #tpu.memory_space<vmem>>, vector<8x128xf32>
    tpu.vector_store %arg6[%c0_5, %c0_6], %6 {strides = array<i32>} : memref<8x128xf32, #tpu.memory_space<vmem>>, vector<8x128xf32>,
    %c0_i32_7 = arith.constant 0 : i32
    %8 = arith.cmpi eq, %arg1, %c0_i32_7 : i32
    %9 = arith.extui %8 : i1 to i32
    %c0_i32_8 = arith.constant 0 : i32
    %10 = arith.cmpi ne, %9, %c0_i32_8 : i32
    scf.if %10 {
      %c0_9 = arith.constant 0 : index
      %c0_10 = arith.constant 0 : index
      %11 = vector.load %arg6[%c0_9, %c0_10] : memref<8x128xf32, #tpu.memory_space<vmem>>, vector<8x128xf32>
      %cst_11 = arith.constant 1.250000e-01 : f32
      %12 = vector.broadcast %cst_11 : f32 to vector<8x128xf32>
      %13 = arith.mulf %11, %12 : vector<8x128xf32>
      %c0_12 = arith.constant 0 : index
      %c0_13 = arith.constant 0 : index
      %14 = vector.load %arg3[%c0_12, %c0_13] : memref<128x128xf32, #tpu.memory_space<vmem>>, vector<128x128xf32>
      %cst_14 = arith.constant dense<0.000000e+00> : vector<8x128xf32>
      %15 = tpu.matmul %13, %14, %cst_14 {dimension_numbers = #tpu.dot_dimension_numbers<[1], [0], [0], [1], [0, 0, 1, 1], [], []>} : vector<8x128xf32>, vector<128x128xf32>, vector<8x128xf32> -> vector<8x128xf32>
      %c0_15 = arith.constant 0 : index
      %c0_16 = arith.constant 0 : index
      %16 = vector.load %arg4[%c0_15, %c0_16] : memref<1x128xf32, #tpu.memory_space<vmem>>, vector<1x128xf32>
      %17 = vector.broadcast %16 : vector<1x128xf32> to vector<8x128xf32>
      %18 = arith.addf %15, %17 : vector<8x128xf32>
      %c0_17 = arith.constant 0 : index
      %c0_18 = arith.constant 0 : index
      %19 = vector.load %arg5[%c0_17, %c0_18] : memref<8x128xf32, #tpu.memory_space<vmem>>, vector<8x128xf32>
      tpu.vector_store %arg5[%c0_17, %c0_18], %18 {strides = array<i32>} : memref<8x128xf32, #tpu.memory_space<vmem>>, vector<8x128xf32>,
    } else {
    }
    return
  }
  func.func @transform_0(%arg0: i32, %arg1: i32) -> (i32, i32, i32) {
    %c0_i32 = arith.constant 0 : i32
    %c0_i32_0 = arith.constant 0 : i32
    return %arg0, %arg1, %c0_i32 : i32, i32, i32
  }
  func.func @transform_1(%arg0: i32, %arg1: i32) -> (i32, i32) {
    %c0_i32 = arith.constant 0 : i32
    %c0_i32_0 = arith.constant 0 : i32
    %c0_i32_1 = arith.constant 0 : i32
    return %c0_i32, %c0_i32_0 : i32, i32
  }
  func.func @transform_2(%arg0: i32, %arg1: i32) -> (i32, i32) {
    %c0_i32 = arith.constant 0 : i32
    %c0_i32_0 = arith.constant 0 : i32
    %c0_i32_1 = arith.constant 0 : i32
    return %c0_i32, %c0_i32_0 : i32, i32
  }
  func.func @transform_3(%arg0: i32, %arg1: i32) -> (i32, i32) {
    %c0_i32 = arith.constant 0 : i32
    %c0_i32_0 = arith.constant 0 : i32
    return %arg0, %c0_i32 : i32, i32
  }
}

</mosaic_0001>

<llo_original>
// kernel: pretrained_speech_models_forward.1
$region0: #{pretrained_speech_models_forward.1}
  #allocation0 [shape = 'u32[]', space=smem, size = 0x4, offset = 0x4, fixed_abs, tag = 'smem constant byte address 0x4 - core index']
  #allocation1 [shape = 'u32[144,128]{1,0:T(1,128)}', space=vmem, size = 0x12000, scoped, tag = 'internal scratch']
  #allocation2 [shape = 'f32[8,128]{1,0:T(8,128)}', space=vmem, size = 0x1000, scoped, tag = 'scratch operand']
  %s0 = inlined_call_operand.hbm [shape: f32[8,8,128], index: 0, kind: input, shape index: {}]
  %s1 = inlined_call_operand.hbm [shape: f32[128,128], index: 1, kind: input, shape index: {}]
  %s2 = inlined_call_operand.hbm [shape: f32[1,128], index: 2, kind: input, shape index: {}]
  %s3 = inlined_call_operand.hbm [shape: f32[8,128], index: 3, kind: output, shape index: {}]
  %s4 = sld [smem:[#allocation0]]
  $region42: #{pretrained_speech_models_forward.1} parent=0
    _
  %s6 = ssub.s32 1, %s4
  %s7 = scalar_select 0, %s6, %s4
  $region1: #{pretrained_speech_models_forward.1} parent=0
    #allocation3 [shape = 'u8[32768]{0}', space=vmem, size = 0x8000, scoped, tag = 'input window, operand 0, single buffered']
    #allocation4 [shape = 's32[1]{0}', space=sflag, size = 0x4, scoped, tag = 'scoped memory for pretrained_speech_models_forward.1']
    #allocation5 [shape = 's32[1]{0}', space=sflag, size = 0x4, scoped, tag = 'scoped memory for pretrained_speech_models_forward.1']
    #allocation6 [shape = 'u8[65536]{0}', space=vmem, size = 0x10000, scoped, tag = 'input window, operand 1, single buffered']
    #allocation7 [shape = 's32[1]{0}', space=sflag, size = 0x4, scoped, tag = 'scoped memory for pretrained_speech_models_forward.1']
    #allocation8 [shape = 'u8[512]{0}', space=vmem, size = 0x400, scoped, tag = 'input window, operand 2, single buffered']
    #allocation9 [shape = 'u8[4096]{0}', space=vmem, size = 0x1000, scoped, tag = 'output window, operand 0, single buffered']
    %8 = vsyncpa [#allocation4], 0
    %9 = vsyncpa [#allocation7], 0
    %10 = vsyncpa [#allocation5], 0
    // Predicated region
    $region2: #{pretrained_speech_models_forward.1} parent=1 // pred_check
      _
    $region3: #{pretrained_speech_models_forward.1} parent=1 // pred_check_branch
      %12 = sbr.rel (0) target = $region5
    $region4: #{pretrained_speech_models_forward.1} parent=1 // pred_region
      %s14 = ssub.s32 1024, 1024
      %15 = vsyncadd [#allocation4], %s14
      %s16 = sshll.u32 [#allocation3], 4
      %s17 = int_to_ptr.vmem [resolvable:$true] %s16
      %22 = dma.hbm_to_vmem [thread:$0]  %s0, 1024, %s17, [#allocation4], 128, 128, 8
    $region5: #{pretrained_speech_models_forward.1} parent=1 // pred_fallthru
      _
    // Predicated region
    $region6: #{pretrained_speech_models_forward.1} parent=1 // pred_check
      _
    $region7: #{pretrained_speech_models_forward.1} parent=1 // pred_check_branch
      %24 = sbr.rel (0) target = $region9
    $region8: #{pretrained_speech_models_forward.1} parent=1 // pred_region
      %s26 = ssub.s32 2048, 2048
      %27 = vsyncadd [#allocation7], %s26
      %s28 = sshll.u32 [#allocation6], 4
      %s29 = int_to_ptr.vmem [resolvable:$true] %s28
      %34 = dma.hbm_to_vmem [thread:$0]  %s1, 2048, %s29, [#allocation7], 128, 128, 8
    $region9: #{pretrained_speech_models_forward.1} parent=1 // pred_fallthru
      _
    // Predicated region
    $region10: #{pretrained_speech_models_forward.1} parent=1 // pred_check
      _
    $region11: #{pretrained_speech_models_forward.1} parent=1 // pred_check_branch
      %36 = sbr.rel (0) target = $region13
    $region12: #{pretrained_speech_models_forward.1} parent=1 // pred_region
      %s38 = ssub.s32 16, 16
      %39 = vsyncadd [#allocation7], %s38
      %s41 = sshll.u32 [#allocation8], 4
      %s42 = int_to_ptr.vmem [resolvable:$true] %s41
      %44 = dma.hbm_to_vmem [thread:$0]  %s2, 16, %s42, [#allocation7]
    $region13: #{pretrained_speech_models_forward.1} parent=1 // pred_fallthru
      _
    // Predicated region
    $region14: #{pretrained_speech_models_forward.1} parent=1 // pred_check
      _
    $region15: #{pretrained_speech_models_forward.1} parent=1 // pred_check_branch
      %46 = sbr.rel (0) target = $region17
    $region16: #{pretrained_speech_models_forward.1} parent=1 // pred_region
      %47 = dma.done [#allocation4], 1024
    $region17: #{pretrained_speech_models_forward.1} parent=1 // pred_fallthru
      _
    // Predicated region
    $region18: #{pretrained_speech_models_forward.1} parent=1 // pred_check
      _
    $region19: #{pretrained_speech_models_forward.1} parent=1 // pred_check_branch
      %49 = sbr.rel (0) target = $region21
    $region20: #{pretrained_speech_models_forward.1} parent=1 // pred_region
      %50 = dma.done [#allocation7], 2048
    $region21: #{pretrained_speech_models_forward.1} parent=1 // pred_fallthru
      _
    // Predicated region
    $region22: #{pretrained_speech_models_forward.1} parent=1 // pred_check
      _
    $region23: #{pretrained_speech_models_forward.1} parent=1 // pred_check_branch
      %52 = sbr.rel (0) target = $region25
    $region24: #{pretrained_speech_models_forward.1} parent=1 // pred_region
      %53 = dma.done [#allocation7], 16
    $region25: #{pretrained_speech_models_forward.1} parent=1 // pred_fallthru
      _
    %p54 = scmp.eq.s32.totalorder 0, 0
    // Predicated region
    $region26: #{pretrained_speech_models_forward.1} parent=1 // pred_check
      %p55 = pneg %p54
    $region27: #{pretrained_speech_models_forward.1} parent=1 // pred_check_branch
      %57 = sbr.rel (%p55) target = $region29
    $region28: #{pretrained_speech_models_forward.1} parent=1 // pred_region
      %58 = vst [vmem:[#allocation2] sm:$0xff] 0.0
    $region29: #{pretrained_speech_models_forward.1} parent=1 // pred_fallthru
      _
    %v59 = vld [vmem:[#allocation2] sm:$0xff]
    %v60 = vld [vmem:[#allocation3] sm:$0xff]
    %v61 = vld [vmem:[#allocation3 + $0x8] sm:$0xff]
    %v62 = vld [vmem:[#allocation3 + $0x10] sm:$0xff]
    %v63 = vld [vmem:[#allocation3 + $0x18] sm:$0xff]
    %v64 = vld [vmem:[#allocation3 + $0x20] sm:$0xff]
    %v65 = vld [vmem:[#allocation3 + $0x28] sm:$0xff]
    %v66 = vld [vmem:[#allocation3 + $0x30] sm:$0xff]
    %v67 = vld [vmem:[#allocation3 + $0x38] sm:$0xff]
    %v68 = vrot.slane %v60, 4
    %v69 = vadd.f32 %v60, %v68
    %v70 = vrot.slane %v69, 2
    %v71 = vadd.f32 %v69, %v70
    %v72 = vrot.slane %v71, 1
    %v73 = vadd.f32 %v71, %v72
    %v74 = vrot.slane %v61, 4
    %v75 = vadd.f32 %v61, %v74
    %v76 = vrot.slane %v75, 2
    %v77 = vadd.f32 %v75, %v76
    %v78 = vrot.slane %v77, 1
    %v79 = vadd.f32 %v77, %v78
    %v80 = vrot.slane %v62, 4
    %v81 = vadd.f32 %v62, %v80
    %v82 = vrot.slane %v81, 2
    %v83 = vadd.f32 %v81, %v82
    %v84 = vrot.slane %v83, 1
    %v85 = vadd.f32 %v83, %v84
    %v86 = vrot.slane %v63, 4
    %v87 = vadd.f32 %v63, %v86
    %v88 = vrot.slane %v87, 2
    %v89 = vadd.f32 %v87, %v88
    %v90 = vrot.slane %v89, 1
    %v91 = vadd.f32 %v89, %v90
    %v92 = vrot.slane %v64, 4
    %v93 = vadd.f32 %v64, %v92
    %v94 = vrot.slane %v93, 2
    %v95 = vadd.f32 %v93, %v94
    %v96 = vrot.slane %v95, 1
    %v97 = vadd.f32 %v95, %v96
    %v98 = vrot.slane %v65, 4
    %v99 = vadd.f32 %v65, %v98
    %v100 = vrot.slane %v99, 2
    %v101 = vadd.f32 %v99, %v100
    %v102 = vrot.slane %v101, 1
    %v103 = vadd.f32 %v101, %v102
    %v104 = vrot.slane %v66, 4
    %v105 = vadd.f32 %v66, %v104
    %v106 = vrot.slane %v105, 2
    %v107 = vadd.f32 %v105, %v106
    %v108 = vrot.slane %v107, 1
    %v109 = vadd.f32 %v107, %v108
    %v110 = vrot.slane %v67, 4
    %v111 = vadd.f32 %v67, %v110
    %v112 = vrot.slane %v111, 2
    %v113 = vadd.f32 %v111, %v112
    %v114 = vrot.slane %v113, 1
    %v115 = vadd.f32 %v113, %v114
    %vm124 = vcmask 1041409
    %v125 = vsel %vm124, %v79, %v73
    %vm126 = vcmask 1042434
    %v127 = vsel %vm126, %v85, %v125
    %vm128 = vcmask 1043459
    %v129 = vsel %vm128, %v91, %v127
    %vm130 = vcmask 1044484
    %v131 = vsel %vm130, %v97, %v129
    %vm132 = vcmask 1045509
    %v133 = vsel %vm132, %v103, %v131
    %vm134 = vcmask 1046534
    %v135 = vsel %vm134, %v109, %v133
    %vm136 = vcmask 1047559
    %v137 = vsel %vm136, %v115, %v135
    %v139 = vadd.f32 %v59, %v137
    %140 = vst [vmem:[#allocation2] sm:$0xff] %v139
    // Predicated region
    $region30: #{pretrained_speech_models_forward.1} parent=1 // pred_check
      %p141 = pneg %p54
    $region31: #{pretrained_speech_models_forward.1} parent=1 // pred_check_branch
      %143 = sbr.rel (%p141) target = $region33
    $region32: #{pretrained_speech_models_forward.1} parent=1 // pred_region
      %v144 = vld [vmem:[#allocation2] sm:$0xff]
      %v145 = vmul.f32 %v144, 0.125
      %v146 = vld [vmem:[#allocation6] sm:$0xff]
      %v147 = vld [vmem:[#allocation6 + $0x8] sm:$0xff]
      %v148 = vld [vmem:[#allocation6 + $0x10] sm:$0xff]
      %v149 = vld [vmem:[#allocation6 + $0x18] sm:$0xff]
      %v150 = vld [vmem:[#allocation6 + $0x20] sm:$0xff]
      %v151 = vld [vmem:[#allocation6 + $0x28] sm:$0xff]
      %v152 = vld [vmem:[#allocation6 + $0x30] sm:$0xff]
      %v153 = vld [vmem:[#allocation6 + $0x38] sm:$0xff]
      %v154 = vld [vmem:[#allocation6 + $0x40] sm:$0xff]
      %v155 = vld [vmem:[#allocation6 + $0x48] sm:$0xff]
      %v156 = vld [vmem:[#allocation6 + $0x50] sm:$0xff]
      %v157 = vld [vmem:[#allocation6 + $0x58] sm:$0xff]
      %v158 = vld [vmem:[#allocation6 + $0x60] sm:$0xff]
      %v159 = vld [vmem:[#allocation6 + $0x68] sm:$0xff]
      %v160 = vld [vmem:[#allocation6 + $0x70] sm:$0xff]
      %v161 = vld [vmem:[#allocation6 + $0x78] sm:$0xff]
      %v162 = vld [vmem:[#allocation8] sm:$0x1]
      %v164 = vlaneseq
      %v165 = vshrl.u32 %v164, 7
      %v166 = vsub.s32 0, %v165
      %v167 = vrot.slane %v162, %v166
      %169 = vmatprep.subr.mxu0 0.0
      %170 = vmatpush1.msra.mxu0 %v146
      %171 = vmatprep.subr.mxu0 0.0
      %172 = vmatpush1.msra.mxu0 %v147
      %173 = vmatprep.subr.mxu0 0.0
      %174 = vmatpush1.msra.mxu0 %v148
      %175 = vmatprep.subr.mxu0 0.0
      %176 = vmatpush1.msra.mxu0 %v149
      %177 = vmatprep.subr.mxu0 0.0
      %178 = vmatpush1.msra.mxu0 %v150
      %179 = vmatprep.subr.mxu0 0.0
      %180 = vmatpush1.msra.mxu0 %v151
      %181 = vmatprep.subr.mxu0 0.0
      %182 = vmatpush1.msra.mxu0 %v152
      %183 = vmatprep.subr.mxu0 0.0
      %184 = vmatpush1.msra.mxu0 %v153
      %185 = vmatprep.subr.mxu0 0.0
      %186 = vmatpush1.msra.mxu0 %v154
      %187 = vmatprep.subr.mxu0 0.0
      %188 = vmatpush1.msra.mxu0 %v155
      %189 = vmatprep.subr.mxu0 0.0
      %190 = vmatpush1.msra.mxu0 %v156
      %191 = vmatprep.subr.mxu0 0.0
      %192 = vmatpush1.msra.mxu0 %v157
      %193 = vmatprep.subr.mxu0 0.0
      %194 = vmatpush1.msra.mxu0 %v158
      %195 = vmatprep.subr.mxu0 0.0
      %196 = vmatpush1.msra.mxu0 %v159
      %197 = vmatprep.subr.mxu0 0.0
      %198 = vmatpush1.msra.mxu0 %v160
      %199 = vmatprep.subr.mxu0 0.0
      %200 = vmatpush1.msra.mxu0 %v161
      %201 = vmatprep.subr.mxu0 0.0
      %202 = vmatpush1.msra.mxu0 0.0
      %203 = vmatprep.subr.mxu0 0.0
      %204 = vmatpush1.msra.mxu0 0.0
      %205 = vmatprep.subr.mxu0 0.0
      %206 = vmatpush1.msra.mxu0 0.0
      %207 = vmatprep.subr.mxu0 0.0
      %208 = vmatpush1.msra.mxu0 0.0
      %209 = vmatprep.subr.mxu0 0.0
      %210 = vmatpush1.msra.mxu0 0.0
      %211 = vmatprep.subr.mxu0 0.0
      %212 = vmatpush1.msra.mxu0 0.0
      %213 = vmatprep.subr.mxu0 0.0
      %214 = vmatpush1.msra.mxu0 0.0
      %215 = vmatprep.subr.mxu0 0.0
      %216 = vmatpush1.msra.mxu0 0.0
      %217 = vmatprep.subr.mxu0 0.0
      %218 = vmatpush1.msra.mxu0 0.0
      %219 = vmatprep.subr.mxu0 0.0
      %220 = vmatpush1.msra.mxu0 0.0
      %221 = vmatprep.subr.mxu0 0.0
      %222 = vmatpush1.msra.mxu0 0.0
      %223 = vmatprep.subr.mxu0 0.0
      %224 = vmatpush1.msra.mxu0 0.0
      %225 = vmatprep.subr.mxu0 0.0
      %226 = vmatpush1.msra.mxu0 0.0
      %227 = vmatprep.subr.mxu0 0.0
      %228 = vmatpush1.msra.mxu0 0.0
      %229 = vmatprep.subr.mxu0 0.0
      %230 = vmatpush1.msra.mxu0 0.0
      %231 = vmatprep.subr.mxu0 0.0
      %232 = vmatpush1.msra.mxu0 0.0
      %233 = vmatprep.mubr.f32.mxu0 0.0
      %234 = vmatmul.mubr.f32.gmra.mrb[0].mxu0 %v145
      %v235 = vpop.f32.mrb[0].mxu0
      %v236 = vadd.f32 %v167, %v235
      %v237 = vpop.f32.mrb[0].mxu0
      %238 = vdwg.mxu0
      %239 = vst [vmem:[#allocation9] sm:$0xff] %v236
    $region33: #{pretrained_speech_models_forward.1} parent=1 // pred_fallthru
      _
    // Predicated region
    $region34: #{pretrained_speech_models_forward.1} parent=1 // pred_check
      _
    $region35: #{pretrained_speech_models_forward.1} parent=1 // pred_check_branch
      %241 = sbr.rel (0) target = $region37
    $region36: #{pretrained_speech_models_forward.1} parent=1 // pred_region
      %s243 = ssub.s32 128, 128
      %244 = vsyncadd [#allocation5], %s243
      %s246 = sshll.u32 [#allocation9], 4
      %s247 = int_to_ptr.vmem [resolvable:$true] %s246
      %249 = dma.vmem_to_hbm [thread:$0]  %s247, 128, %s3, [#allocation5]
    $region37: #{pretrained_speech_models_forward.1} parent=1 // pred_fallthru
      _
    // Predicated region
    $region38: #{pretrained_speech_models_forward.1} parent=1 // pred_check
      _
    $region39: #{pretrained_speech_models_forward.1} parent=1 // pred_check_branch
      %251 = sbr.rel (0) target = $region41
    $region40: #{pretrained_speech_models_forward.1} parent=1 // pred_region
      %252 = dma.done [#allocation5], 128
    $region41: #{pretrained_speech_models_forward.1} parent=1 // pred_fallthru
      _
    %253 = vsyncpa [#allocation4], 1
    %254 = vsyncpa [#allocation7], 1
    %255 = vsyncpa [#allocation5], 1

</llo_original>
